<compile_context>
chip_gen: v7x
topology: tpu7x:2x2x1
jax: 0.10.0
libtpu: 0.0.40
codegen_flags: <defaults>
</compile_context>

<pallas_src>
import functools

import jax
import jax.numpy as jnp
from jax.experimental import pallas as pl
from jax.experimental.pallas import tpu as pltpu


def _gem_kernel(p_ref, x_ref, o_ref, acc_ref, *, eps, hw_true, tile, pad):
    """One spatial tile of GeM pooling.

    p_ref:   (1, C, 1)    per-channel exponent
    x_ref:   (Nb, C, T)   spatial tile of the flattened feature map
    o_ref:   (Nb, C, 1)   pooled output (written on the last spatial tile)
    acc_ref: (Nb, C, 1)   f32 running sum of clamp(x, eps) ** p
    """
    j = pl.program_id(1)

    @pl.when(j == 0)
    def _():
        acc_ref[...] = jnp.zeros_like(acc_ref)

    x = x_ref[...].astype(jnp.float32)
    p = p_ref[...].astype(jnp.float32)            # (1, C, 1) -> broadcasts

    # clamp(min=eps) ** p, computed as exp(p * log(x)); x > 0 after the clamp.
    xc = jnp.maximum(x, eps)
    xp = jnp.exp(p * jnp.log(xc))

    if pad > 0:
        # Zero the contribution of the spatial padding (only the last tile
        # actually contains padding, but the predicate is globally correct).
        lane = jax.lax.broadcasted_iota(jnp.int32, xp.shape, dimension=2)
        valid = (j * tile + lane) < hw_true
        xp = jnp.where(valid, xp, 0.0)

    acc_ref[...] += jnp.sum(xp, axis=-1, keepdims=True)

    @pl.when(j == pl.num_programs(1) - 1)
    def _():
        mean = acc_ref[...] * (1.0 / hw_true)     # exact mean over true H*W
        y = jnp.exp(jnp.log(mean) / p)            # mean ** (1/p)
        o_ref[...] = y.astype(o_ref.dtype)


def gem_pallas(x, p, eps=1e-6, *, target_block_bytes=2 << 20):
    """x: (N, C, H, W); p: (mp,) with mp == 1 or mp == C. Returns (N, C, 1, 1)."""
    n, c, h, w = x.shape
    hw = h * w
    itemsize = jnp.dtype(x.dtype).itemsize

    # Per-channel exponent (mp == 1 broadcasts over all channels, as in torch).
    p_arr = jnp.asarray(p, jnp.float32).reshape(-1)
    if p_arr.shape[0] == 1:
        p_arr = jnp.broadcast_to(p_arr, (c,))
    assert p_arr.shape[0] == c, "mp must be 1 or equal to the channel count"
    p3 = p_arr.reshape(1, c, 1)

    # ---- lane-dense spatial tile (multiple of 128), sized to ~target bytes ----
    lanes_budget = max(128, target_block_bytes // max(1, c * itemsize))
    tile = min(pl.cdiv(hw, 128) * 128, (lanes_budget // 128) * 128)
    tile = max(tile, 128)
    num_hw_tiles = pl.cdiv(hw, tile)
    hw_pad = num_hw_tiles * tile
    pad = hw_pad - hw

    x3 = x.reshape(n, c, hw)
    if pad > 0:
        x3 = jnp.pad(x3, ((0, 0), (0, 0), (0, pad)))

    # ---- block several batch elements per step when feature maps are small ----
    nb = max(1, min(n, target_block_bytes // max(1, c * tile * itemsize)))
    while n % nb != 0:
        nb -= 1

    grid = (n // nb, num_hw_tiles)

    kernel = functools.partial(
        _gem_kernel, eps=float(eps), hw_true=hw, tile=tile, pad=pad
    )

    out = pl.pallas_call(
        kernel,
        out_shape=jax.ShapeDtypeStruct((n, c, 1), x.dtype),
        grid_spec=pltpu.PrefetchScalarGridSpec(
            num_scalar_prefetch=0,
            grid=grid,
            in_specs=[
                pl.BlockSpec((1, c, 1), lambda i, j: (0, 0, 0)),       # p
                pl.BlockSpec((nb, c, tile), lambda i, j: (i, 0, j)),   # x
            ],
            out_specs=pl.BlockSpec((nb, c, 1), lambda i, j: (i, 0, 0)),
            scratch_shapes=[pltpu.VMEM((nb, c, 1), jnp.float32)],
        ),
        compiler_params=pltpu.CompilerParams(
            dimension_semantics=("parallel", "arbitrary"),
        ),
        cost_estimate=pl.CostEstimate(
            flops=3 * n * c * hw,
            transcendentals=2 * n * c * hw,
            bytes_accessed=n * c * hw * itemsize + n * c * itemsize + c * 4,
        ),
    )(p3, x3)

    return out.reshape(n, c, 1, 1)


def gem_ref(x, p, eps=1e-6):
    """Pure-JAX reference matching F.avg_pool2d(x.clamp(eps)**p, (H,W))**(1/p)."""
    p_b = jnp.asarray(p, jnp.float32).reshape(-1, 1, 1)       # (mp, 1, 1)
    xp = jnp.maximum(x.astype(jnp.float32), eps) ** p_b
    pooled = jnp.mean(xp, axis=(-2, -1), keepdims=True)        # (N, C, 1, 1)
    return (pooled ** (1.0 / p_b)).astype(x.dtype)


if __name__ == "__main__":
    key = jax.random.PRNGKey(0)
    # NCHW, small shapes: batch=2, channels=4, spatial=16x16
    x = jax.random.normal(key, (2, 4, 16, 16), dtype=jnp.float32)
    # GeMmp defaults: p = 3, mp = 1, eps = 1e-6 (learnable exponent parameter)
    p = jnp.ones((1,), dtype=jnp.float32) * 3.0
    eps = 1e-6

    y = gem_pallas(x, p, eps=eps)
    jax.block_until_ready(y)

    y_ref = gem_ref(x, p, eps=eps)
    assert y.shape == (2, 4, 1, 1) and y.dtype == x.dtype
    assert jnp.allclose(y, y_ref, atol=1e-5, rtol=1e-4), float(
        jnp.max(jnp.abs(y - y_ref))
    )

    print("KERNEL_OK")
</pallas_src>

<mosaic_0001>
module attributes {stable_mosaic.version = 11 : i64} {
  func.func @_gem_kernel(%arg0: i32, %arg1: i32, %arg2: memref<1x4x1xf32, #tpu.memory_space<vmem>>, %arg3: memref<2x4x256xf32, #tpu.memory_space<vmem>>, %arg4: memref<2x4x1xf32, #tpu.memory_space<vmem>>, %arg5: memref<2x4x1xf32, #tpu.memory_space<vmem>>) attributes {dimension_semantics = [#tpu.dimension_semantics<parallel>, #tpu.dimension_semantics<arbitrary>], iteration_bounds = array<i64: 1, 1>, scalar_prefetch = 0 : i64, scratch_operands = 1 : i64, tpu.core_type = #tpu.core_type<tc>, window_params = [{pipeline_mode = #tpu.pipeline_mode<synchronous>, transform_indices = @transform_0, window_bounds = array<i64: 1, 4, 1>}, {transform_indices = @transform_1, window_bounds = array<i64: 2, 4, 256>}, {transform_indices = @transform_2, window_bounds = array<i64: 2, 4, 1>}]} {
    %c0_i32 = arith.constant 0 : i32
    %0 = arith.cmpi eq, %arg1, %c0_i32 : i32
    %1 = arith.extui %0 : i1 to i32
    %c0_i32_0 = arith.constant 0 : i32
    %2 = arith.cmpi ne, %1, %c0_i32_0 : i32
    scf.if %2 {
      %cst_15 = arith.constant 0.000000e+00 : f32
      %19 = vector.broadcast %cst_15 : f32 to vector<2x4x1xf32>
      %c0_16 = arith.constant 0 : index
      %c0_17 = arith.constant 0 : index
      %c0_18 = arith.constant 0 : index
      %20 = vector.load %arg5[%c0_16, %c0_17, %c0_18] : memref<2x4x1xf32, #tpu.memory_space<vmem>>, vector<2x4x1xf32>
      tpu.vector_store %arg5[%c0_16, %c0_17, %c0_18], %19 {strides = array<i32>} : memref<2x4x1xf32, #tpu.memory_space<vmem>>, vector<2x4x1xf32>,
    } else {
    }
    %c0 = arith.constant 0 : index
    %c0_1 = arith.constant 0 : index
    %c0_2 = arith.constant 0 : index
    %3 = vector.load %arg3[%c0, %c0_1, %c0_2] : memref<2x4x256xf32, #tpu.memory_space<vmem>>, vector<2x4x256xf32>
    %c0_3 = arith.constant 0 : index
    %c0_4 = arith.constant 0 : index
    %c0_5 = arith.constant 0 : index
    %4 = vector.load %arg2[%c0_3, %c0_4, %c0_5] : memref<1x4x1xf32, #tpu.memory_space<vmem>>, vector<1x4x1xf32>
    %cst = arith.constant 9.99999997E-7 : f32
    %5 = vector.broadcast %cst : f32 to vector<2x4x256xf32>
    %6 = arith.maximumf %3, %5 : vector<2x4x256xf32>
    %7 = math.log %6 : vector<2x4x256xf32>
    %8 = vector.broadcast %4 : vector<1x4x1xf32> to vector<2x4x256xf32>
    %9 = arith.mulf %8, %7 : vector<2x4x256xf32>
    %10 = math.exp %9 : vector<2x4x256xf32>
    %c0_6 = arith.constant 0 : index
    %c0_7 = arith.constant 0 : index
    %c0_8 = arith.constant 0 : index
    %11 = vector.load %arg5[%c0_6, %c0_7, %c0_8] : memref<2x4x1xf32, #tpu.memory_space<vmem>>, vector<2x4x1xf32>
    %cst_9 = arith.constant dense<0.000000e+00> : vector<2x4xf32>
    %12 = vector.multi_reduction <add>, %10, %cst_9 [2] : vector<2x4x256xf32> to vector<2x4xf32>
    %13 = vector.shape_cast %12 : vector<2x4xf32> to vector<2x4x1xf32>
    %14 = arith.addf %11, %13 : vector<2x4x1xf32>
    %c0_10 = arith.constant 0 : index
    %c0_11 = arith.constant 0 : index
    %c0_12 = arith.constant 0 : index
    %15 = vector.load %arg5[%c0_10, %c0_11, %c0_12] : memref<2x4x1xf32, #tpu.memory_space<vmem>>, vector<2x4x1xf32>
    tpu.vector_store %arg5[%c0_10, %c0_11, %c0_12], %14 {strides = array<i32>} : memref<2x4x1xf32, #tpu.memory_space<vmem>>, vector<2x4x1xf32>,
    %c0_i32_13 = arith.constant 0 : i32
    %16 = arith.cmpi eq, %arg1, %c0_i32_13 : i32
    %17 = arith.extui %16 : i1 to i32
    %c0_i32_14 = arith.constant 0 : i32
    %18 = arith.cmpi ne, %17, %c0_i32_14 : i32
    scf.if %18 {
      %c0_15 = arith.constant 0 : index
      %c0_16 = arith.constant 0 : index
      %c0_17 = arith.constant 0 : index
      %19 = vector.load %arg5[%c0_15, %c0_16, %c0_17] : memref<2x4x1xf32, #tpu.memory_space<vmem>>, vector<2x4x1xf32>
      %cst_18 = arith.constant 3.906250e-03 : f32
      %20 = vector.broadcast %cst_18 : f32 to vector<2x4x1xf32>
      %21 = arith.mulf %19, %20 : vector<2x4x1xf32>
      %22 = math.log %21 : vector<2x4x1xf32>
      %23 = vector.broadcast %4 : vector<1x4x1xf32> to vector<2x4x1xf32>
      %24 = arith.divf %22, %23 : vector<2x4x1xf32>
      %25 = math.exp %24 : vector<2x4x1xf32>
      %c0_19 = arith.constant 0 : index
      %c0_20 = arith.constant 0 : index
      %c0_21 = arith.constant 0 : index
      %26 = vector.load %arg4[%c0_19, %c0_20, %c0_21] : memref<2x4x1xf32, #tpu.memory_space<vmem>>, vector<2x4x1xf32>
      tpu.vector_store %arg4[%c0_19, %c0_20, %c0_21], %25 {strides = array<i32>} : memref<2x4x1xf32, #tpu.memory_space<vmem>>, vector<2x4x1xf32>,
    } else {
    }
    return
  }
  func.func @transform_0(%arg0: i32, %arg1: i32) -> (i32, i32, i32) {
    %c0_i32 = arith.constant 0 : i32
    %c0_i32_0 = arith.constant 0 : i32
    %c0_i32_1 = arith.constant 0 : i32
    %c0_i32_2 = arith.constant 0 : i32
    return %c0_i32, %c0_i32_0, %c0_i32_1 : i32, i32, i32
  }
  func.func @transform_1(%arg0: i32, %arg1: i32) -> (i32, i32, i32) {
    %c0_i32 = arith.constant 0 : i32
    %c0_i32_0 = arith.constant 0 : i32
    return %arg0, %c0_i32, %arg1 : i32, i32, i32
  }
  func.func @transform_2(%arg0: i32, %arg1: i32) -> (i32, i32, i32) {
    %c0_i32 = arith.constant 0 : i32
    %c0_i32_0 = arith.constant 0 : i32
    %c0_i32_1 = arith.constant 0 : i32
    return %arg0, %c0_i32, %c0_i32_0 : i32, i32, i32
  }
}

</mosaic_0001>

<llo_original>
// kernel: tpu_custom_call.1
$region0: #{tpu_custom_call.1}
  #allocation0 [shape = 'u32[]', space=smem, size = 0x4, offset = 0x4, fixed_abs, tag = 'smem constant byte address 0x4 - core index']
  #allocation1 [shape = 'u32[144,128]{1,0:T(1,128)}', space=vmem, size = 0x12000, scoped, tag = 'internal scratch']
  #allocation2 [shape = 'f32[2,4,1]{2,1,0:T(4,128)}', space=vmem, size = 0x1000, scoped, tag = 'scratch operand']
  %s0 = inlined_call_operand.vmem [shape: f32[1,4,1], index: 0, kind: input, shape index: {}]
  %s1 = inlined_call_operand.hbm [shape: f32[2,4,256], index: 1, kind: input, shape index: {}]
  %s2 = inlined_call_operand.vmem [shape: f32[2,4,1], index: 2, kind: output, shape index: {}]
  %s3 = sld [smem:[#allocation0]]
  $region30: #{tpu_custom_call.1} parent=0
    _
  %s5 = ssub.s32 1, %s3
  %s6 = scalar_select 0, %s5, %s3
  $region1: #{tpu_custom_call.1} parent=0
    #allocation3 [shape = 'u8[8192]{0}', space=vmem, size = 0x2000, scoped, tag = 'input window, operand 1, single buffered']
    #allocation4 [shape = 's32[1]{0}', space=sflag, size = 0x4, scoped, tag = 'scoped memory for tpu_custom_call.1']
    %7 = vsyncpa [#allocation4], 0
    // Predicated region
    $region2: #{tpu_custom_call.1} parent=1 // pred_check
      _
    $region3: #{tpu_custom_call.1} parent=1 // pred_check_branch
      %9 = sbr.rel (0) target = $region5
    $region4: #{tpu_custom_call.1} parent=1 // pred_region
      _
    $region5: #{tpu_custom_call.1} parent=1 // pred_fallthru
      _
    // Predicated region
    $region6: #{tpu_custom_call.1} parent=1 // pred_check
      _
    $region7: #{tpu_custom_call.1} parent=1 // pred_check_branch
      %11 = sbr.rel (0) target = $region9
    $region8: #{tpu_custom_call.1} parent=1 // pred_region
      %s13 = ssub.s32 256, 256
      %14 = vsyncadd [#allocation4], %s13
      %s15 = sshll.u32 [#allocation3], 4
      %s16 = int_to_ptr.vmem [resolvable:$true] %s15
      %21 = dma.hbm_to_vmem [thread:$0]  %s1, 256, %s16, [#allocation4], 128, 128, 8
    $region9: #{tpu_custom_call.1} parent=1 // pred_fallthru
      _
    // Predicated region
    $region10: #{tpu_custom_call.1} parent=1 // pred_check
      _
    $region11: #{tpu_custom_call.1} parent=1 // pred_check_branch
      %23 = sbr.rel (0) target = $region13
    $region12: #{tpu_custom_call.1} parent=1 // pred_region
      %24 = dma.done [#allocation4], 256
    $region13: #{tpu_custom_call.1} parent=1 // pred_fallthru
      _
    %p25 = scmp.eq.s32.totalorder 0, 0
    // Predicated region
    $region14: #{tpu_custom_call.1} parent=1 // pred_check
      %p26 = pneg %p25
    $region15: #{tpu_custom_call.1} parent=1 // pred_check_branch
      %28 = sbr.rel (%p26) target = $region17
    $region16: #{tpu_custom_call.1} parent=1 // pred_region
      %vm29 = vcmask 3072
      %30 = vst.msk [vmem:[#allocation2] sm:$0xf] %vm29, 0.0
      %31 = vst.msk [vmem:[#allocation2 + $0x4] sm:$0xf] %vm29, 0.0
    $region17: #{tpu_custom_call.1} parent=1 // pred_fallthru
      _
    %v32 = vld [vmem:[#allocation3] sm:$0xff]
    %v33 = vld [vmem:[#allocation3 + $0x8] sm:$0xff]
    %v34 = vld [vmem:[%s0] sm:$0xf]
    %v35 = vmax.f32 %v32, 1e-06
    %v36 = vmax.f32 %v33, 1e-06
    %v37 = vlog2.pop %v35
    %v38 = vmul.f32 %v37, 0.6931472
    %v39 = vlog2.pop %v36
    %v40 = vmul.f32 %v39, 0.6931472
    %42 = vset.pattern.permute.xlu0 0
    %43 = vperm.xlu0 %42, %v34
    %v44 = vpop.permute.xlu0 %43
    %v48 = vcombine.high %v38, %v38
    %v49 = vcombine.high %v40, %v40
    %v52 = vmul.f32 %v44, %v38
    %v53 = vmul.f32 %v44, %v48
    %v54 = vmul.f32 %v44, %v40
    %v55 = vmul.f32 %v44, %v49
    %v56 = vmul.f32 %v52, 1.442695
    %v57 = vpow.pop %v56
    %v58 = vmul.f32 %v53, 1.442695
    %v59 = vpow.pop %v58
    %v60 = vmul.f32 %v54, 1.442695
    %v61 = vpow.pop %v60
    %v62 = vmul.f32 %v55, 1.442695
    %v63 = vpow.pop %v62
    %v64 = vld [vmem:[#allocation2] sm:$0xf]
    %v65 = vld [vmem:[#allocation2 + $0x4] sm:$0xf]
    %vm66 = vcmask 1043456
    %v67 = vsel %vm66, %v57, 0.0
    %v68 = vsel %vm66, %v59, 0.0
    %v69 = vadd.f32 %v67, %v68
    %70 = vadd.xlane.f32.xlu0 %v69
    %v71 = vpop.xlane.xlu0 %70
    %v72 = vsel %vm66, %v61, 0.0
    %v73 = vsel %vm66, %v63, 0.0
    %v74 = vadd.f32 %v72, %v73
    %75 = vadd.xlane.f32.xlu0 %v74
    %v76 = vpop.xlane.xlu0 %75
    %v77 = vadd.f32 %v64, %v71
    %v78 = vadd.f32 %v65, %v76
    %vm79 = vcmask 3072
    %80 = vst.msk [vmem:[#allocation2] sm:$0xf] %vm79, %v77
    %81 = vst.msk [vmem:[#allocation2 + $0x4] sm:$0xf] %vm79, %v78
    // Predicated region
    $region18: #{tpu_custom_call.1} parent=1 // pred_check
      %p82 = pneg %p25
    $region19: #{tpu_custom_call.1} parent=1 // pred_check_branch
      %84 = sbr.rel (%p82) target = $region21
    $region20: #{tpu_custom_call.1} parent=1 // pred_region
      %v85 = vld [vmem:[#allocation2] sm:$0xf]
      %v86 = vld [vmem:[#allocation2 + $0x4] sm:$0xf]
      %v87 = vmul.f32 %v85, 0.00390625
      %v88 = vmul.f32 %v86, 0.00390625
      %v89 = vlog2.pop %v87
      %v90 = vmul.f32 %v89, 0.6931472
      %v91 = vlog2.pop %v88
      %v92 = vmul.f32 %v91, 0.6931472
      %v93 = vrcp.pop %v34
      %v94 = vmul.f32 %v90, %v93
      %v95 = vmul.f32 %v92, %v93
      %v96 = vmul.f32 %v94, 1.442695
      %v97 = vpow.pop %v96
      %v98 = vmul.f32 %v95, 1.442695
      %v99 = vpow.pop %v98
      %100 = vst.msk [vmem:[%s2] sm:$0xf] %vm79, %v97
      %101 = vst.msk [vmem:[%s2 + $0x4] sm:$0xf] %vm79, %v99
    $region21: #{tpu_custom_call.1} parent=1 // pred_fallthru
      _
    // Predicated region
    $region22: #{tpu_custom_call.1} parent=1 // pred_check
      _
    $region23: #{tpu_custom_call.1} parent=1 // pred_check_branch
      %103 = sbr.rel (0) target = $region25
    $region24: #{tpu_custom_call.1} parent=1 // pred_region
      _
    $region25: #{tpu_custom_call.1} parent=1 // pred_fallthru
      _
    // Predicated region
    $region26: #{tpu_custom_call.1} parent=1 // pred_check
      _
    $region27: #{tpu_custom_call.1} parent=1 // pred_check_branch
      %105 = sbr.rel (0) target = $region29
    $region28: #{tpu_custom_call.1} parent=1 // pred_region
      _
    $region29: #{tpu_custom_call.1} parent=1 // pred_fallthru
      _
    %106 = vsyncpa [#allocation4], 1

</llo_original>
